<compile_context>
chip_gen: v7x
topology: tpu7x:2x2x1
jax: 0.10.0
libtpu: 0.0.40
codegen_flags: <defaults>
</compile_context>

<pallas_src>
import math

import jax
import jax.numpy as jnp
from jax.experimental import pallas as pl
from jax.experimental.pallas import tpu as pltpu

BN_EPS = 1e-5  # nn.BatchNorm2d default


def _round_up(x, m):
    return ((x + m - 1) // m) * m


# ----------------------------- Pallas head kernel ---------------------------

def head_kernel(feat_ref, wb_ref, bb_ref, wf_ref, bf_ref, x_ref, y_ref):
    """x = feat @ Wb + bb ; y = x @ Wf + bf.

    Weights are (in, out) bfloat16; biases f32; accumulation f32 on the MXU.
    """
    f = feat_ref[...].astype(jnp.bfloat16)                                  # (TB, Fin)
    x = jnp.dot(f, wb_ref[...], preferred_element_type=jnp.float32) + bb_ref[...]
    x_ref[...] = x.astype(x_ref.dtype)                                      # (TB, Cb)
    y = (jnp.dot(x.astype(jnp.bfloat16), wf_ref[...],
                 preferred_element_type=jnp.float32) + bf_ref[...])
    y_ref[...] = y.astype(y_ref.dtype)                                      # (TB, Cf_pad)


def prepare_head_params(wb, bb, wf, bf, *, class_num):
    """One-time parameter preprocessing (do NOT call per forward pass).

    wb: (Cb, Fin)  bottleneck weight (PyTorch (out, in) layout)
    bb: (Cb,)      bottleneck bias
    wf: (C, Cb)    fc weight
    bf: (C,)       fc bias
    Returns lane-dense, bf16 (in, out) weights with the fc out-dim padded to a
    multiple of 128, plus f32 row-vector biases.
    """
    cb, fin = wb.shape
    cf_pad = max(128, _round_up(class_num, 128))
    wb_t = jnp.transpose(wb).astype(jnp.bfloat16)                           # (Fin, Cb)
    wf_t = jnp.zeros((cb, cf_pad), jnp.bfloat16).at[:, :class_num].set(
        jnp.transpose(wf).astype(jnp.bfloat16))                             # (Cb, Cf_pad)
    bb_r = bb.reshape(1, cb).astype(jnp.float32)
    bf_r = jnp.zeros((1, cf_pad), jnp.float32).at[:, :class_num].set(
        bf.astype(jnp.float32))
    return wb_t, bb_r, wf_t, bf_r


def resnetfc_head(features, head_params, *, block_b=256):
    """features: (B, Fin) f32.  head_params from prepare_head_params.

    Returns (x, y_padded) where x = bottleneck(features) of shape (B, Cb) and
    y_padded = fc(x) of shape (B, Cf_pad) (slice [:, :class_num] at the
    consumer; the padded store keeps the kernel's output vst unmasked).
    """
    wb_t, bb_r, wf_t, bf_r = head_params
    B, fin = features.shape
    cb = wb_t.shape[1]
    cf_pad = wf_t.shape[1]

    # Batch tile: 8-row (sublane) aligned, capped at block_b (256 fills the
    # v6e/v7x MXU M dim; use block_b=128 on v5e).  cdiv + pad handles any B.
    tb = min(block_b, _round_up(B, 8))
    grid_b = pl.cdiv(B, tb)
    b_pad = grid_b * tb
    if b_pad != B:
        features = jnp.pad(features, ((0, b_pad - B), (0, 0)))

    x_out, y_out = pl.pallas_call(
        head_kernel,
        out_shape=(jax.ShapeDtypeStruct((b_pad, cb), jnp.float32),
                   jax.ShapeDtypeStruct((b_pad, cf_pad), jnp.float32)),
        grid_spec=pltpu.PrefetchScalarGridSpec(
            num_scalar_prefetch=0,
            grid=(grid_b,),
            in_specs=[
                pl.BlockSpec((tb, fin), lambda i: (i, 0)),        # batch tile
                pl.BlockSpec((fin, cb), lambda i: (0, 0)),        # Wb (resident)
                pl.BlockSpec((1, cb), lambda i: (0, 0)),          # bb
                pl.BlockSpec((cb, cf_pad), lambda i: (0, 0)),     # Wf (resident)
                pl.BlockSpec((1, cf_pad), lambda i: (0, 0)),      # bf
            ],
            out_specs=[
                pl.BlockSpec((tb, cb), lambda i: (i, 0)),
                pl.BlockSpec((tb, cf_pad), lambda i: (i, 0)),
            ],
        ),
        compiler_params=pltpu.CompilerParams(
            dimension_semantics=("parallel",)),
    )(features, wb_t, bb_r, wf_t, bf_r)

    if b_pad != B:
        x_out = x_out[:B]
        y_out = y_out[:B]
    return x_out, y_out


def resnetfc_head_reference(features, wb, bb, wf, bf):
    """Pure-JAX reference with the same bf16-operand / f32-accumulate math."""
    f = features.astype(jnp.bfloat16)
    x = jnp.dot(f, jnp.transpose(wb).astype(jnp.bfloat16),
                preferred_element_type=jnp.float32) + bb
    y = jnp.dot(x.astype(jnp.bfloat16), jnp.transpose(wf).astype(jnp.bfloat16),
                preferred_element_type=jnp.float32) + bf
    return x, y


# ------------------- ResNet-18 feature_layers (XLA ops) ---------------------

def conv2d(x, w, stride, pad):
    return jax.lax.conv_general_dilated(
        x, w, window_strides=(stride, stride),
        padding=[(pad, pad), (pad, pad)],
        dimension_numbers=('NCHW', 'OIHW', 'NCHW'))


def batchnorm(x, gamma, beta):
    # training-mode BN (batch statistics, biased variance) as in a freshly
    # constructed nn.Module that has not been switched to .eval()
    mu = jnp.mean(x, axis=(0, 2, 3), keepdims=True)
    var = jnp.mean((x - mu) ** 2, axis=(0, 2, 3), keepdims=True)
    return ((x - mu) * jax.lax.rsqrt(var + BN_EPS)
            * gamma.reshape(1, -1, 1, 1) + beta.reshape(1, -1, 1, 1))


def maxpool3x3s2(x):
    return jax.lax.reduce_window(
        x, -jnp.inf, jax.lax.max,
        window_dimensions=(1, 1, 3, 3),
        window_strides=(1, 1, 2, 2),
        padding=[(0, 0), (0, 0), (1, 1), (1, 1)])


def basic_block(x, p):
    identity = x
    out = conv2d(x, p['conv1'], p['stride'], 1)
    out = jnp.maximum(batchnorm(out, p['bn1g'], p['bn1b']), 0.0)
    out = conv2d(out, p['conv2'], 1, 1)
    out = batchnorm(out, p['bn2g'], p['bn2b'])
    if 'down_w' in p:
        identity = batchnorm(conv2d(x, p['down_w'], p['stride'], 0),
                             p['down_g'], p['down_b'])
    return jnp.maximum(out + identity, 0.0)


def resnet18_features(x, params):
    x = conv2d(x, params['conv1'], 2, 3)
    x = jnp.maximum(batchnorm(x, params['bn1g'], params['bn1b']), 0.0)
    x = maxpool3x3s2(x)
    for stage in params['layers']:
        for blk in stage:
            x = basic_block(x, blk)
    return jnp.mean(x, axis=(2, 3))          # AdaptiveAvgPool2d((1,1)) + view


def make_resnet18_params(key):
    keys = iter(jax.random.split(key, 64))

    def nk():
        return next(keys)

    def conv_w(out_c, in_c, k):
        return (jax.random.normal(nk(), (out_c, in_c, k, k), jnp.float32)
                * math.sqrt(2.0 / (in_c * k * k)))

    def bn(c):
        return (1.0 + 0.02 * jax.random.normal(nk(), (c,), jnp.float32),
                jnp.zeros((c,), jnp.float32))

    p = {'conv1': conv_w(64, 3, 7)}
    p['bn1g'], p['bn1b'] = bn(64)
    layers = []
    in_c = 64
    for out_c, n_blocks, stride in [(64, 2, 1), (128, 2, 2), (256, 2, 2), (512, 2, 2)]:
        stage = []
        for b in range(n_blocks):
            s = stride if b == 0 else 1
            blk = {'stride': s,
                   'conv1': conv_w(out_c, in_c, 3),
                   'conv2': conv_w(out_c, out_c, 3)}
            blk['bn1g'], blk['bn1b'] = bn(out_c)
            blk['bn2g'], blk['bn2b'] = bn(out_c)
            if s != 1 or in_c != out_c:
                blk['down_w'] = conv_w(out_c, in_c, 1)
                blk['down_g'], blk['down_b'] = bn(out_c)
            stage.append(blk)
            in_c = out_c
        layers.append(stage)
    p['layers'] = layers
    return p


# ---------------------------------- demo ------------------------------------

if __name__ == "__main__":
    key = jax.random.PRNGKey(0)
    k_bb_params, k_img, k_wb, k_bb, k_wf, k_bf = jax.random.split(key, 6)

    B = 8                    # batch (rows stacked as the MXU M dimension)
    class_num = 10           # small class count for the demo
    bottleneck_dim = 256     # ResNetFc default
    feat_in = 512            # ResNet-18 fc.in_features

    img = jax.random.normal(k_img, (B, 3, 32, 32), jnp.float32)

    backbone = make_resnet18_params(k_bb_params)
    # bottleneck / fc Linear params (xavier-ish weights, small biases)
    wb = jax.random.normal(k_wb, (bottleneck_dim, feat_in), jnp.float32) / math.sqrt(feat_in)
    bb = 0.01 * jax.random.normal(k_bb, (bottleneck_dim,), jnp.float32)
    wf = jax.random.normal(k_wf, (class_num, bottleneck_dim), jnp.float32) / math.sqrt(bottleneck_dim)
    bf = 0.01 * jax.random.normal(k_bf, (class_num,), jnp.float32)

    # One-time head-parameter preprocessing (transpose / pad / bf16 cast).
    head_params = prepare_head_params(wb, bb, wf, bf, class_num=class_num)
    head_params = jax.block_until_ready(head_params)

    # feature_layers(x) + flatten  (XLA conv backbone — see TODO(synk) above)
    feats = resnet18_features(img, backbone)                      # (B, 512)
    feats = jax.block_until_ready(feats)

    # Pallas fused head:  x = bottleneck(feats), y = fc(x)  (padded logits)
    x, y_pad = resnetfc_head(feats, head_params)
    x = jax.block_until_ready(x)
    y_pad = jax.block_until_ready(y_pad)
    y = y_pad[:, :class_num]                 # consumer-side slice of padded logits

    # Pure-JAX reference of the head with matching bf16-operand math.
    x_ref, y_ref = resnetfc_head_reference(feats, wb, bb, wf, bf)

    assert x.shape == (B, bottleneck_dim), x.shape
    assert y.shape == (B, class_num), y.shape
    if not (jnp.allclose(x, x_ref, atol=2e-2, rtol=2e-2)
            and jnp.allclose(y, y_ref, atol=2e-2, rtol=2e-2)):
        raise AssertionError("Pallas head does not match reference")

    print("KERNEL_OK")
</pallas_src>

<mosaic_0001>
module attributes {stable_mosaic.version = 11 : i64} {
  func.func @head_kernel(%arg0: i32, %arg1: memref<8x512xf32, #tpu.memory_space<vmem>>, %arg2: memref<512x256xbf16, #tpu.memory_space<vmem>>, %arg3: memref<1x256xf32, #tpu.memory_space<vmem>>, %arg4: memref<256x128xbf16, #tpu.memory_space<vmem>>, %arg5: memref<1x128xf32, #tpu.memory_space<vmem>>, %arg6: memref<8x256xf32, #tpu.memory_space<vmem>>, %arg7: memref<8x128xf32, #tpu.memory_space<vmem>>) attributes {dimension_semantics = [#tpu.dimension_semantics<parallel>], iteration_bounds = array<i64: 1>, scalar_prefetch = 0 : i64, scratch_operands = 0 : i64, tpu.core_type = #tpu.core_type<tc>, window_params = [{transform_indices = @transform_0, window_bounds = array<i64: 8, 512>}, {pipeline_mode = #tpu.pipeline_mode<synchronous>, transform_indices = @transform_1, window_bounds = array<i64: 512, 256>}, {pipeline_mode = #tpu.pipeline_mode<synchronous>, transform_indices = @transform_2, window_bounds = array<i64: 1, 256>}, {pipeline_mode = #tpu.pipeline_mode<synchronous>, transform_indices = @transform_3, window_bounds = array<i64: 256, 128>}, {pipeline_mode = #tpu.pipeline_mode<synchronous>, transform_indices = @transform_4, window_bounds = array<i64: 1, 128>}, {transform_indices = @transform_5, window_bounds = array<i64: 8, 256>}, {transform_indices = @transform_6, window_bounds = array<i64: 8, 128>}]} {
    %c0 = arith.constant 0 : index
    %c0_0 = arith.constant 0 : index
    %0 = vector.load %arg1[%c0, %c0_0] : memref<8x512xf32, #tpu.memory_space<vmem>>, vector<8x512xf32>
    %1 = arith.truncf %0 : vector<8x512xf32> to vector<8x512xbf16>
    %c0_1 = arith.constant 0 : index
    %c0_2 = arith.constant 0 : index
    %2 = vector.load %arg2[%c0_1, %c0_2] : memref<512x256xbf16, #tpu.memory_space<vmem>>, vector<512x256xbf16>
    %cst = arith.constant dense<0.000000e+00> : vector<8x256xf32>
    %3 = tpu.matmul %1, %2, %cst {dimension_numbers = #tpu.dot_dimension_numbers<[1], [0], [0], [1], [0, 0, 1, 1], [], []>} : vector<8x512xbf16>, vector<512x256xbf16>, vector<8x256xf32> -> vector<8x256xf32>
    %c0_3 = arith.constant 0 : index
    %c0_4 = arith.constant 0 : index
    %4 = vector.load %arg3[%c0_3, %c0_4] : memref<1x256xf32, #tpu.memory_space<vmem>>, vector<1x256xf32>
    %5 = vector.broadcast %4 : vector<1x256xf32> to vector<8x256xf32>
    %6 = arith.addf %3, %5 : vector<8x256xf32>
    %c0_5 = arith.constant 0 : index
    %c0_6 = arith.constant 0 : index
    %7 = vector.load %arg6[%c0_5, %c0_6] : memref<8x256xf32, #tpu.memory_space<vmem>>, vector<8x256xf32>
    tpu.vector_store %arg6[%c0_5, %c0_6], %6 {strides = array<i32>} : memref<8x256xf32, #tpu.memory_space<vmem>>, vector<8x256xf32>,
    %8 = arith.truncf %6 : vector<8x256xf32> to vector<8x256xbf16>
    %c0_7 = arith.constant 0 : index
    %c0_8 = arith.constant 0 : index
    %9 = vector.load %arg4[%c0_7, %c0_8] : memref<256x128xbf16, #tpu.memory_space<vmem>>, vector<256x128xbf16>
    %cst_9 = arith.constant dense<0.000000e+00> : vector<8x128xf32>
    %10 = tpu.matmul %8, %9, %cst_9 {dimension_numbers = #tpu.dot_dimension_numbers<[1], [0], [0], [1], [0, 0, 1, 1], [], []>} : vector<8x256xbf16>, vector<256x128xbf16>, vector<8x128xf32> -> vector<8x128xf32>
    %c0_10 = arith.constant 0 : index
    %c0_11 = arith.constant 0 : index
    %11 = vector.load %arg5[%c0_10, %c0_11] : memref<1x128xf32, #tpu.memory_space<vmem>>, vector<1x128xf32>
    %12 = vector.broadcast %11 : vector<1x128xf32> to vector<8x128xf32>
    %13 = arith.addf %10, %12 : vector<8x128xf32>
    %c0_12 = arith.constant 0 : index
    %c0_13 = arith.constant 0 : index
    %14 = vector.load %arg7[%c0_12, %c0_13] : memref<8x128xf32, #tpu.memory_space<vmem>>, vector<8x128xf32>
    tpu.vector_store %arg7[%c0_12, %c0_13], %13 {strides = array<i32>} : memref<8x128xf32, #tpu.memory_space<vmem>>, vector<8x128xf32>,
    return
  }
  func.func @transform_0(%arg0: i32) -> (i32, i32) {
    %c0_i32 = arith.constant 0 : i32
    %c0_i32_0 = arith.constant 0 : i32
    return %arg0, %c0_i32 : i32, i32
  }
  func.func @transform_1(%arg0: i32) -> (i32, i32) {
    %c0_i32 = arith.constant 0 : i32
    %c0_i32_0 = arith.constant 0 : i32
    %c0_i32_1 = arith.constant 0 : i32
    return %c0_i32, %c0_i32_0 : i32, i32
  }
  func.func @transform_2(%arg0: i32) -> (i32, i32) {
    %c0_i32 = arith.constant 0 : i32
    %c0_i32_0 = arith.constant 0 : i32
    %c0_i32_1 = arith.constant 0 : i32
    return %c0_i32, %c0_i32_0 : i32, i32
  }
  func.func @transform_3(%arg0: i32) -> (i32, i32) {
    %c0_i32 = arith.constant 0 : i32
    %c0_i32_0 = arith.constant 0 : i32
    %c0_i32_1 = arith.constant 0 : i32
    return %c0_i32, %c0_i32_0 : i32, i32
  }
  func.func @transform_4(%arg0: i32) -> (i32, i32) {
    %c0_i32 = arith.constant 0 : i32
    %c0_i32_0 = arith.constant 0 : i32
    %c0_i32_1 = arith.constant 0 : i32
    return %c0_i32, %c0_i32_0 : i32, i32
  }
  func.func @transform_5(%arg0: i32) -> (i32, i32) {
    %c0_i32 = arith.constant 0 : i32
    %c0_i32_0 = arith.constant 0 : i32
    return %arg0, %c0_i32 : i32, i32
  }
  func.func @transform_6(%arg0: i32) -> (i32, i32) {
    %c0_i32 = arith.constant 0 : i32
    %c0_i32_0 = arith.constant 0 : i32
    return %arg0, %c0_i32 : i32, i32
  }
}

</mosaic_0001>

<llo_original>
// kernel: tpu_custom_call.1
$region0: #{tpu_custom_call.1}
  #allocation0 [shape = 'u32[]', space=smem, size = 0x4, offset = 0x4, fixed_abs, tag = 'smem constant byte address 0x4 - core index']
  #allocation1 [shape = 'u32[144,128]{1,0:T(1,128)}', space=vmem, size = 0x12000, scoped, tag = 'internal scratch']
  %s0 = inlined_call_operand.hbm [shape: f32[8,512], index: 0, kind: input, shape index: {}]
  %s1 = inlined_call_operand.hbm [shape: bf16[512,256], index: 1, kind: input, shape index: {}]
  %s2 = inlined_call_operand.vmem [shape: f32[1,256], index: 2, kind: input, shape index: {}]
  %s3 = inlined_call_operand.hbm [shape: bf16[256,128], index: 3, kind: input, shape index: {}]
  %s4 = inlined_call_operand.vmem [shape: f32[1,128], index: 4, kind: input, shape index: {}]
  %s5 = inlined_call_operand.hbm [shape: f32[8,256], index: 5, kind: output, shape index: {0}]
  %s6 = inlined_call_operand.hbm [shape: f32[8,128], index: 6, kind: output, shape index: {1}]
  %7 = xla_tuple %s5, %s6
  %s8 = sld [smem:[#allocation0]]
  $region50: #{tpu_custom_call.1} parent=0
    _
  %s10 = ssub.s32 1, %s8
  %s11 = scalar_select 0, %s10, %s8
  $region1: #{tpu_custom_call.1} parent=0
    #allocation2 [shape = 'u8[16384]{0}', space=vmem, size = 0x4000, scoped, tag = 'input window, operand 0, single buffered']
    #allocation3 [shape = 's32[1]{0}', space=sflag, size = 0x4, scoped, tag = 'scoped memory for tpu_custom_call.1']
    #allocation4 [shape = 's32[1]{0}', space=sflag, size = 0x4, scoped, tag = 'scoped memory for tpu_custom_call.1']
    #allocation5 [shape = 'u8[262144]{0}', space=vmem, size = 0x40000, scoped, tag = 'input window, operand 1, single buffered']
    #allocation6 [shape = 's32[1]{0}', space=sflag, size = 0x4, scoped, tag = 'scoped memory for tpu_custom_call.1']
    #allocation7 [shape = 'u8[65536]{0}', space=vmem, size = 0x10000, scoped, tag = 'input window, operand 3, single buffered']
    #allocation8 [shape = 'u8[8192]{0}', space=vmem, size = 0x2000, scoped, tag = 'output window, operand 0, single buffered']
    #allocation9 [shape = 'u8[4096]{0}', space=vmem, size = 0x1000, scoped, tag = 'output window, operand 1, single buffered']
    #allocation10 [shape = 's32[1]{0}', space=sflag, size = 0x4, scoped, tag = 'scoped memory for tpu_custom_call.1']
    %12 = vsyncpa [#allocation3], 0
    %13 = vsyncpa [#allocation6], 0
    %14 = vsyncpa [#allocation4], 0
    %15 = vsyncpa [#allocation10], 0
    // Predicated region
    $region2: #{tpu_custom_call.1} parent=1 // pred_check
      _
    $region3: #{tpu_custom_call.1} parent=1 // pred_check_branch
      %17 = sbr.rel (0) target = $region5
    $region4: #{tpu_custom_call.1} parent=1 // pred_region
      %s19 = ssub.s32 512, 512
      %20 = vsyncadd [#allocation3], %s19
      %s22 = sshll.u32 [#allocation2], 4
      %s23 = int_to_ptr.vmem [resolvable:$true] %s22
      %25 = dma.hbm_to_vmem [thread:$0]  %s0, 512, %s23, [#allocation3]
    $region5: #{tpu_custom_call.1} parent=1 // pred_fallthru
      _
    // Predicated region
    $region6: #{tpu_custom_call.1} parent=1 // pred_check
      _
    $region7: #{tpu_custom_call.1} parent=1 // pred_check_branch
      %27 = sbr.rel (0) target = $region9
    $region8: #{tpu_custom_call.1} parent=1 // pred_region
      %s29 = ssub.s32 8192, 8192
      %30 = vsyncadd [#allocation6], %s29
      %s31 = sshll.u32 [#allocation5], 4
      %s32 = int_to_ptr.vmem [resolvable:$true] %s31
      %37 = dma.hbm_to_vmem [thread:$0]  %s1, 8192, %s32, [#allocation6], 128, 128, 8
    $region9: #{tpu_custom_call.1} parent=1 // pred_fallthru
      _
    // Predicated region
    $region10: #{tpu_custom_call.1} parent=1 // pred_check
      _
    $region11: #{tpu_custom_call.1} parent=1 // pred_check_branch
      %39 = sbr.rel (0) target = $region13
    $region12: #{tpu_custom_call.1} parent=1 // pred_region
      _
    $region13: #{tpu_custom_call.1} parent=1 // pred_fallthru
      _
    // Predicated region
    $region14: #{tpu_custom_call.1} parent=1 // pred_check
      _
    $region15: #{tpu_custom_call.1} parent=1 // pred_check_branch
      %41 = sbr.rel (0) target = $region17
    $region16: #{tpu_custom_call.1} parent=1 // pred_region
      %s43 = ssub.s32 2048, 2048
      %44 = vsyncadd [#allocation6], %s43
      %s45 = sshll.u32 [#allocation7], 4
      %s46 = int_to_ptr.vmem [resolvable:$true] %s45
      %51 = dma.hbm_to_vmem [thread:$0]  %s3, 2048, %s46, [#allocation6], 64, 64, 4
    $region17: #{tpu_custom_call.1} parent=1 // pred_fallthru
      _
    // Predicated region
    $region18: #{tpu_custom_call.1} parent=1 // pred_check
      _
    $region19: #{tpu_custom_call.1} parent=1 // pred_check_branch
      %53 = sbr.rel (0) target = $region21
    $region20: #{tpu_custom_call.1} parent=1 // pred_region
      _
    $region21: #{tpu_custom_call.1} parent=1 // pred_fallthru
      _
    // Predicated region
    $region22: #{tpu_custom_call.1} parent=1 // pred_check
      _
    $region23: #{tpu_custom_call.1} parent=1 // pred_check_branch
      %55 = sbr.rel (0) target = $region25
    $region24: #{tpu_custom_call.1} parent=1 // pred_region
      %56 = dma.done [#allocation3], 512
    $region25: #{tpu_custom_call.1} parent=1 // pred_fallthru
      _
    // Predicated region
    $region26: #{tpu_custom_call.1} parent=1 // pred_check
      _
    $region27: #{tpu_custom_call.1} parent=1 // pred_check_branch
      %58 = sbr.rel (0) target = $region29
    $region28: #{tpu_custom_call.1} parent=1 // pred_region
      %59 = dma.done [#allocation6], 8192
    $region29: #{tpu_custom_call.1} parent=1 // pred_fallthru
      _
    // Predicated region
    $region30: #{tpu_custom_call.1} parent=1 // pred_check
      _
    $region31: #{tpu_custom_call.1} parent=1 // pred_check_branch
      %61 = sbr.rel (0) target = $region33
    $region32: #{tpu_custom_call.1} parent=1 // pred_region
      %62 = dma.done [#allocation6], 2048
    $region33: #{tpu_custom_call.1} parent=1 // pred_fallthru
      _
    %v64 = vld [vmem:[#allocation2] sm:$0xff]
    %v65 = vld [vmem:[#allocation2 + $0x8] sm:$0xff]
    %v66 = vld [vmem:[#allocation2 + $0x10] sm:$0xff]
    %v67 = vld [vmem:[#allocation2 + $0x18] sm:$0xff]
    %v68 = vpack.c.bf16 %v64, %v64
    %v69 = vpack.c.bf16 %v65, %v65
    %v70 = vpack.c.bf16 %v66, %v66
    %v71 = vpack.c.bf16 %v67, %v67
    %v72 = vld [vmem:[#allocation5] sm:$0xff]
    %v73 = vld [vmem:[#allocation5 + $0x8] sm:$0xff]
    %v74 = vld [vmem:[#allocation5 + $0x10] sm:$0xff]
    %v75 = vld [vmem:[#allocation5 + $0x18] sm:$0xff]
    %v76 = vld [vmem:[#allocation5 + $0x20] sm:$0xff]
    %v77 = vld [vmem:[#allocation5 + $0x28] sm:$0xff]
    %v78 = vld [vmem:[#allocation5 + $0x30] sm:$0xff]
    %v79 = vld [vmem:[#allocation5 + $0x38] sm:$0xff]
    %v80 = vld [vmem:[#allocation5 + $0x40] sm:$0xff]
    %v81 = vld [vmem:[#allocation5 + $0x48] sm:$0xff]
    %v82 = vld [vmem:[#allocation5 + $0x50] sm:$0xff]
    %v83 = vld [vmem:[#allocation5 + $0x58] sm:$0xff]
    %v84 = vld [vmem:[#allocation5 + $0x60] sm:$0xff]
    %v85 = vld [vmem:[#allocation5 + $0x68] sm:$0xff]
    %v86 = vld [vmem:[#allocation5 + $0x70] sm:$0xff]
    %v87 = vld [vmem:[#allocation5 + $0x78] sm:$0xff]
    %v88 = vld [vmem:[#allocation5 + $0x80] sm:$0xff]
    %v89 = vld [vmem:[#allocation5 + $0x88] sm:$0xff]
    %v90 = vld [vmem:[#allocation5 + $0x90] sm:$0xff]
    %v91 = vld [vmem:[#allocation5 + $0x98] sm:$0xff]
    %v92 = vld [vmem:[#allocation5 + $0xa0] sm:$0xff]
    %v93 = vld [vmem:[#allocation5 + $0xa8] sm:$0xff]
    %v94 = vld [vmem:[#allocation5 + $0xb0] sm:$0xff]
    %v95 = vld [vmem:[#allocation5 + $0xb8] sm:$0xff]
    %v96 = vld [vmem:[#allocation5 + $0xc0] sm:$0xff]
    %v97 = vld [vmem:[#allocation5 + $0xc8] sm:$0xff]
    %v98 = vld [vmem:[#allocation5 + $0xd0] sm:$0xff]
    %v99 = vld [vmem:[#allocation5 + $0xd8] sm:$0xff]
    %v100 = vld [vmem:[#allocation5 + $0xe0] sm:$0xff]
    %v101 = vld [vmem:[#allocation5 + $0xe8] sm:$0xff]
    %v102 = vld [vmem:[#allocation5 + $0xf0] sm:$0xff]
    %v103 = vld [vmem:[#allocation5 + $0xf8] sm:$0xff]
    %v104 = vld [vmem:[#allocation5 + $0x100] sm:$0xff]
    %v105 = vld [vmem:[#allocation5 + $0x108] sm:$0xff]
    %v106 = vld [vmem:[#allocation5 + $0x110] sm:$0xff]
    %v107 = vld [vmem:[#allocation5 + $0x118] sm:$0xff]
    %v108 = vld [vmem:[#allocation5 + $0x120] sm:$0xff]
    %v109 = vld [vmem:[#allocation5 + $0x128] sm:$0xff]
    %v110 = vld [vmem:[#allocation5 + $0x130] sm:$0xff]
    %v111 = vld [vmem:[#allocation5 + $0x138] sm:$0xff]
    %v112 = vld [vmem:[#allocation5 + $0x140] sm:$0xff]
    %v113 = vld [vmem:[#allocation5 + $0x148] sm:$0xff]
    %v114 = vld [vmem:[#allocation5 + $0x150] sm:$0xff]
    %v115 = vld [vmem:[#allocation5 + $0x158] sm:$0xff]
    %v116 = vld [vmem:[#allocation5 + $0x160] sm:$0xff]
    %v117 = vld [vmem:[#allocation5 + $0x168] sm:$0xff]
    %v118 = vld [vmem:[#allocation5 + $0x170] sm:$0xff]
    %v119 = vld [vmem:[#allocation5 + $0x178] sm:$0xff]
    %v120 = vld [vmem:[#allocation5 + $0x180] sm:$0xff]
    %v121 = vld [vmem:[#allocation5 + $0x188] sm:$0xff]
    %v122 = vld [vmem:[#allocation5 + $0x190] sm:$0xff]
    %v123 = vld [vmem:[#allocation5 + $0x198] sm:$0xff]
    %v124 = vld [vmem:[#allocation5 + $0x1a0] sm:$0xff]
    %v125 = vld [vmem:[#allocation5 + $0x1a8] sm:$0xff]
    %v126 = vld [vmem:[#allocation5 + $0x1b0] sm:$0xff]
    %v127 = vld [vmem:[#allocation5 + $0x1b8] sm:$0xff]
    %v128 = vld [vmem:[#allocation5 + $0x1c0] sm:$0xff]
    %v129 = vld [vmem:[#allocation5 + $0x1c8] sm:$0xff]
    %v130 = vld [vmem:[#allocation5 + $0x1d0] sm:$0xff]
    %v131 = vld [vmem:[#allocation5 + $0x1d8] sm:$0xff]
    %v132 = vld [vmem:[#allocation5 + $0x1e0] sm:$0xff]
    %v133 = vld [vmem:[#allocation5 + $0x1e8] sm:$0xff]
    %v134 = vld [vmem:[#allocation5 + $0x1f0] sm:$0xff]
    %v135 = vld [vmem:[#allocation5 + $0x1f8] sm:$0xff]
    %v136 = vld [vmem:[%s2] sm:$0x3]
    %v138 = vlaneseq
    %v139 = vshrl.u32 %v138, 7
    %v140 = vsub.s32 0, %v139
    %v141 = vrot.slane %v136, %v140
    %v142 = vlaneseq
    %v143 = vshrl.u32 %v142, 7
    %v144 = vsub.s32 1, %v143
    %v145 = vrot.slane %v136, %v144
    %v212 = vunpack.c.l.b16 %v72
    %v213 = vunpack.c.h.b16 %v72
    %v214 = vunpack.c.l.b16 %v73
    %v215 = vunpack.c.h.b16 %v73
    %v216 = vunpack.c.l.b16 %v74
    %v217 = vunpack.c.h.b16 %v74
    %v218 = vunpack.c.l.b16 %v75
    %v219 = vunpack.c.h.b16 %v75
    %v220 = vunpack.c.l.b16 %v76
    %v221 = vunpack.c.h.b16 %v76
    %v222 = vunpack.c.l.b16 %v77
    %v223 = vunpack.c.h.b16 %v77
    %v224 = vunpack.c.l.b16 %v78
    %v225 = vunpack.c.h.b16 %v78
    %v226 = vunpack.c.l.b16 %v79
    %v227 = vunpack.c.h.b16 %v79
    %v228 = vunpack.c.l.b16 %v80
    %v229 = vunpack.c.h.b16 %v80
    %v230 = vunpack.c.l.b16 %v81
    %v231 = vunpack.c.h.b16 %v81
    %v232 = vunpack.c.l.b16 %v82
    %v233 = vunpack.c.h.b16 %v82
    %v234 = vunpack.c.l.b16 %v83
    %v235 = vunpack.c.h.b16 %v83
    %v236 = vunpack.c.l.b16 %v84
    %v237 = vunpack.c.h.b16 %v84
    %v238 = vunpack.c.l.b16 %v85
    %v239 = vunpack.c.h.b16 %v85
    %v240 = vunpack.c.l.b16 %v86
    %v241 = vunpack.c.h.b16 %v86
    %v242 = vunpack.c.l.b16 %v87
    %v243 = vunpack.c.h.b16 %v87
    %v244 = vunpack.c.l.b16 %v88
    %v245 = vunpack.c.h.b16 %v88
    %v246 = vunpack.c.l.b16 %v89
    %v247 = vunpack.c.h.b16 %v89
    %v248 = vunpack.c.l.b16 %v90
    %v249 = vunpack.c.h.b16 %v90
    %v250 = vunpack.c.l.b16 %v91
    %v251 = vunpack.c.h.b16 %v91
    %v252 = vunpack.c.l.b16 %v92
    %v253 = vunpack.c.h.b16 %v92
    %v254 = vunpack.c.l.b16 %v93
    %v255 = vunpack.c.h.b16 %v93
    %v256 = vunpack.c.l.b16 %v94
    %v257 = vunpack.c.h.b16 %v94
    %v258 = vunpack.c.l.b16 %v95
    %v259 = vunpack.c.h.b16 %v95
    %v260 = vunpack.c.l.b16 %v96
    %v261 = vunpack.c.h.b16 %v96
    %v262 = vunpack.c.l.b16 %v97
    %v263 = vunpack.c.h.b16 %v97
    %v264 = vunpack.c.l.b16 %v98
    %v265 = vunpack.c.h.b16 %v98
    %v266 = vunpack.c.l.b16 %v99
    %v267 = vunpack.c.h.b16 %v99
    %v268 = vunpack.c.l.b16 %v100
    %v269 = vunpack.c.h.b16 %v100
    %v270 = vunpack.c.l.b16 %v101
    %v271 = vunpack.c.h.b16 %v101
    %v272 = vunpack.c.l.b16 %v102
    %v273 = vunpack.c.h.b16 %v102
    %v274 = vunpack.c.l.b16 %v103
    %v275 = vunpack.c.h.b16 %v103
    %v276 = vunpack.c.l.b16 %v104
    %v277 = vunpack.c.h.b16 %v104
    %v278 = vunpack.c.l.b16 %v105
    %v279 = vunpack.c.h.b16 %v105
    %v280 = vunpack.c.l.b16 %v106
    %v281 = vunpack.c.h.b16 %v106
    %v282 = vunpack.c.l.b16 %v107
    %v283 = vunpack.c.h.b16 %v107
    %v284 = vunpack.c.l.b16 %v108
    %v285 = vunpack.c.h.b16 %v108
    %v286 = vunpack.c.l.b16 %v109
    %v287 = vunpack.c.h.b16 %v109
    %v288 = vunpack.c.l.b16 %v110
    %v289 = vunpack.c.h.b16 %v110
    %v290 = vunpack.c.l.b16 %v111
    %v291 = vunpack.c.h.b16 %v111
    %v292 = vunpack.c.l.b16 %v112
    %v293 = vunpack.c.h.b16 %v112
    %v294 = vunpack.c.l.b16 %v113
    %v295 = vunpack.c.h.b16 %v113
    %v296 = vunpack.c.l.b16 %v114
    %v297 = vunpack.c.h.b16 %v114
    %v298 = vunpack.c.l.b16 %v115
    %v299 = vunpack.c.h.b16 %v115
    %v300 = vunpack.c.l.b16 %v116
    %v301 = vunpack.c.h.b16 %v116
    %v302 = vunpack.c.l.b16 %v117
    %v303 = vunpack.c.h.b16 %v117
    %v304 = vunpack.c.l.b16 %v118
    %v305 = vunpack.c.h.b16 %v118
    %v306 = vunpack.c.l.b16 %v119
    %v307 = vunpack.c.h.b16 %v119
    %v308 = vunpack.c.l.b16 %v120
    %v309 = vunpack.c.h.b16 %v120
    %v310 = vunpack.c.l.b16 %v121
    %v311 = vunpack.c.h.b16 %v121
    %v312 = vunpack.c.l.b16 %v122
    %v313 = vunpack.c.h.b16 %v122
    %v314 = vunpack.c.l.b16 %v123
    %v315 = vunpack.c.h.b16 %v123
    %v316 = vunpack.c.l.b16 %v124
    %v317 = vunpack.c.h.b16 %v124
    %v318 = vunpack.c.l.b16 %v125
    %v319 = vunpack.c.h.b16 %v125
    %v320 = vunpack.c.l.b16 %v126
    %v321 = vunpack.c.h.b16 %v126
    %v322 = vunpack.c.l.b16 %v127
    %v323 = vunpack.c.h.b16 %v127
    %v324 = vunpack.c.l.b16 %v128
    %v325 = vunpack.c.h.b16 %v128
    %v326 = vunpack.c.l.b16 %v129
    %v327 = vunpack.c.h.b16 %v129
    %v328 = vunpack.c.l.b16 %v130
    %v329 = vunpack.c.h.b16 %v130
    %v330 = vunpack.c.l.b16 %v131
    %v331 = vunpack.c.h.b16 %v131
    %v332 = vunpack.c.l.b16 %v132
    %v333 = vunpack.c.h.b16 %v132
    %v334 = vunpack.c.l.b16 %v133
    %v335 = vunpack.c.h.b16 %v133
    %v336 = vunpack.c.l.b16 %v134
    %v337 = vunpack.c.h.b16 %v134
    %v338 = vunpack.c.l.b16 %v135
    %v339 = vunpack.c.h.b16 %v135
    %v340 = vpack.c.b16 %v214, %v212
    %v341 = vpack.c.b16 %v215, %v213
    %v342 = vpack.c.b16 %v218, %v216
    %v343 = vpack.c.b16 %v219, %v217
    %v344 = vpack.c.b16 %v222, %v220
    %v345 = vpack.c.b16 %v223, %v221
    %v346 = vpack.c.b16 %v226, %v224
    %v347 = vpack.c.b16 %v227, %v225
    %v348 = vpack.c.b16 %v230, %v228
    %v349 = vpack.c.b16 %v231, %v229
    %v350 = vpack.c.b16 %v234, %v232
    %v351 = vpack.c.b16 %v235, %v233
    %v352 = vpack.c.b16 %v238, %v236
    %v353 = vpack.c.b16 %v239, %v237
    %v354 = vpack.c.b16 %v242, %v240
    %v355 = vpack.c.b16 %v243, %v241
    %v356 = vpack.c.b16 %v246, %v244
    %v357 = vpack.c.b16 %v247, %v245
    %v358 = vpack.c.b16 %v250, %v248
    %v359 = vpack.c.b16 %v251, %v249
    %v360 = vpack.c.b16 %v254, %v252
    %v361 = vpack.c.b16 %v255, %v253
    %v362 = vpack.c.b16 %v258, %v256
    %v363 = vpack.c.b16 %v259, %v257
    %v364 = vpack.c.b16 %v262, %v260
    %v365 = vpack.c.b16 %v263, %v261
    %v366 = vpack.c.b16 %v266, %v264
    %v367 = vpack.c.b16 %v267, %v265
    %v368 = vpack.c.b16 %v270, %v268
    %v369 = vpack.c.b16 %v271, %v269
    %v370 = vpack.c.b16 %v274, %v272
    %v371 = vpack.c.b16 %v275, %v273
    %v372 = vpack.c.b16 %v278, %v276
    %v373 = vpack.c.b16 %v279, %v277
    %v374 = vpack.c.b16 %v282, %v280
    %v375 = vpack.c.b16 %v283, %v281
    %v376 = vpack.c.b16 %v286, %v284
    %v377 = vpack.c.b16 %v287, %v285
    %v378 = vpack.c.b16 %v290, %v288
    %v379 = vpack.c.b16 %v291, %v289
    %v380 = vpack.c.b16 %v294, %v292
    %v381 = vpack.c.b16 %v295, %v293
    %v382 = vpack.c.b16 %v298, %v296
    %v383 = vpack.c.b16 %v299, %v297
    %v384 = vpack.c.b16 %v302, %v300
    %v385 = vpack.c.b16 %v303, %v301
    %v386 = vpack.c.b16 %v306, %v304
    %v387 = vpack.c.b16 %v307, %v305
    %v388 = vpack.c.b16 %v310, %v308
    %v389 = vpack.c.b16 %v311, %v309
    %v390 = vpack.c.b16 %v314, %v312
    %v391 = vpack.c.b16 %v315, %v313
    %v392 = vpack.c.b16 %v318, %v316
    %v393 = vpack.c.b16 %v319, %v317
    %v394 = vpack.c.b16 %v322, %v320
    %v395 = vpack.c.b16 %v323, %v321
    %v396 = vpack.c.b16 %v326, %v324
    %v397 = vpack.c.b16 %v327, %v325
    %v398 = vpack.c.b16 %v330, %v328
    %v399 = vpack.c.b16 %v331, %v329
    %v400 = vpack.c.b16 %v334, %v332
    %v401 = vpack.c.b16 %v335, %v333
    %v402 = vpack.c.b16 %v338, %v336
    %v403 = vpack.c.b16 %v339, %v337
    %468 = vmatprep.subr.bf16.mxu0 %v341
    %469 = vmatpush1.bf16.msra.mxu0 %v340
    %470 = vmatprep.subr.bf16.mxu0 %v343
    %471 = vmatpush1.bf16.msra.mxu0 %v342
    %472 = vmatprep.subr.bf16.mxu0 %v345
    %473 = vmatpush1.bf16.msra.mxu0 %v344
    %474 = vmatprep.subr.bf16.mxu0 %v347
    %475 = vmatpush1.bf16.msra.mxu0 %v346
    %476 = vmatprep.subr.bf16.mxu0 %v349
    %477 = vmatpush1.bf16.msra.mxu0 %v348
    %478 = vmatprep.subr.bf16.mxu0 %v351
    %479 = vmatpush1.bf16.msra.mxu0 %v350
    %480 = vmatprep.subr.bf16.mxu0 %v353
    %481 = vmatpush1.bf16.msra.mxu0 %v352
    %482 = vmatprep.subr.bf16.mxu0 %v355
    %483 = vmatpush1.bf16.msra.mxu0 %v354
    %484 = vmatprep.subr.bf16.mxu0 %v357
    %485 = vmatpush1.bf16.msra.mxu0 %v356
    %486 = vmatprep.subr.bf16.mxu0 %v359
    %487 = vmatpush1.bf16.msra.mxu0 %v358
    %488 = vmatprep.subr.bf16.mxu0 %v361
    %489 = vmatpush1.bf16.msra.mxu0 %v360
    %490 = vmatprep.subr.bf16.mxu0 %v363
    %491 = vmatpush1.bf16.msra.mxu0 %v362
    %492 = vmatprep.subr.bf16.mxu0 %v365
    %493 = vmatpush1.bf16.msra.mxu0 %v364
    %494 = vmatprep.subr.bf16.mxu0 %v367
    %495 = vmatpush1.bf16.msra.mxu0 %v366
    %496 = vmatprep.subr.bf16.mxu0 %v369
    %497 = vmatpush1.bf16.msra.mxu0 %v368
    %498 = vmatprep.subr.bf16.mxu0 %v371
    %499 = vmatpush1.bf16.msra.mxu0 %v370
    %500 = vmatprep.mubr.bf16.mxu0 %v69
    %501 = vmatmul.mubr.bf16.gmra.mrb[0].mxu0 %v68
    %v502 = vpop.f32.mrb[0].mxu0
    %v503 = vadd.f32 %v141, %v502
    %v504 = vpop.f32.mrb[0].mxu0
    %v505 = vadd.f32 %v145, %v504
    %v506 = vpop.f32.mrb[0].mxu0
    %v507 = vpop.f32.mrb[0].mxu0
    %508 = vdwg.mxu0
    %509 = vmatprep.subr.bf16.mxu0 %v373
    %510 = vmatpush1.bf16.msra.mxu0 %v372
    %511 = vmatprep.subr.bf16.mxu0 %v375
    %512 = vmatpush1.bf16.msra.mxu0 %v374
    %513 = vmatprep.subr.bf16.mxu0 %v377
    %514 = vmatpush1.bf16.msra.mxu0 %v376
    %515 = vmatprep.subr.bf16.mxu0 %v379
    %516 = vmatpush1.bf16.msra.mxu0 %v378
    %517 = vmatprep.subr.bf16.mxu0 %v381
    %518 = vmatpush1.bf16.msra.mxu0 %v380
    %519 = vmatprep.subr.bf16.mxu0 %v383
    %520 = vmatpush1.bf16.msra.mxu0 %v382
    %521 = vmatprep.subr.bf16.mxu0 %v385
    %522 = vmatpush1.bf16.msra.mxu0 %v384
    %523 = vmatprep.subr.bf16.mxu0 %v387
    %524 = vmatpush1.bf16.msra.mxu0 %v386
    %525 = vmatprep.subr.bf16.mxu0 %v389
    %526 = vmatpush1.bf16.msra.mxu0 %v388
    %527 = vmatprep.subr.bf16.mxu0 %v391
    %528 = vmatpush1.bf16.msra.mxu0 %v390
    %529 = vmatprep.subr.bf16.mxu0 %v393
    %530 = vmatpush1.bf16.msra.mxu0 %v392
    %531 = vmatprep.subr.bf16.mxu0 %v395
    %532 = vmatpush1.bf16.msra.mxu0 %v394
    %533 = vmatprep.subr.bf16.mxu0 %v397
    %534 = vmatpush1.bf16.msra.mxu0 %v396
    %535 = vmatprep.subr.bf16.mxu0 %v399
    %536 = vmatpush1.bf16.msra.mxu0 %v398
    %537 = vmatprep.subr.bf16.mxu0 %v401
    %538 = vmatpush1.bf16.msra.mxu0 %v400
    %539 = vmatprep.subr.bf16.mxu0 %v403
    %540 = vmatpush1.bf16.msra.mxu0 %v402
    %541 = vmatprep.mubr.bf16.mxu0 %v71
    %542 = vmatmul.mubr.bf16.gmra.mrb[0].mxu0 %v70
    %v543 = vpop.f32.mrb[0].mxu0
    %v544 = vadd.f32 %v503, %v543
    %v545 = vpop.f32.mrb[0].mxu0
    %v546 = vadd.f32 %v505, %v545
    %v547 = vpop.f32.mrb[0].mxu0
    %v548 = vpop.f32.mrb[0].mxu0
    %549 = vdwg.mxu0
    %550 = vst [vmem:[#allocation8] sm:$0xff] %v544
    %551 = vst [vmem:[#allocation8 + $0x8] sm:$0xff] %v546
    %v552 = vpack.c.bf16 %v544, %v544
    %v553 = vpack.c.bf16 %v546, %v546
    %v554 = vld [vmem:[#allocation7] sm:$0xf]
    %v555 = vld [vmem:[#allocation7 + $0x4] sm:$0xf]
    %v556 = vld [vmem:[#allocation7 + $0x8] sm:$0xf]
    %v557 = vld [vmem:[#allocation7 + $0xc] sm:$0xf]
    %v558 = vld [vmem:[#allocation7 + $0x10] sm:$0xf]
    %v559 = vld [vmem:[#allocation7 + $0x14] sm:$0xf]
    %v560 = vld [vmem:[#allocation7 + $0x18] sm:$0xf]
    %v561 = vld [vmem:[#allocation7 + $0x1c] sm:$0xf]
    %v562 = vld [vmem:[#allocation7 + $0x20] sm:$0xf]
    %v563 = vld [vmem:[#allocation7 + $0x24] sm:$0xf]
    %v564 = vld [vmem:[#allocation7 + $0x28] sm:$0xf]
    %v565 = vld [vmem:[#allocation7 + $0x2c] sm:$0xf]
    %v566 = vld [vmem:[#allocation7 + $0x30] sm:$0xf]
    %v567 = vld [vmem:[#allocation7 + $0x34] sm:$0xf]
    %v568 = vld [vmem:[#allocation7 + $0x38] sm:$0xf]
    %v569 = vld [vmem:[#allocation7 + $0x3c] sm:$0xf]
    %v570 = vld [vmem:[#allocation7 + $0x40] sm:$0xf]
    %v571 = vld [vmem:[#allocation7 + $0x44] sm:$0xf]
    %v572 = vld [vmem:[#allocation7 + $0x48] sm:$0xf]
    %v573 = vld [vmem:[#allocation7 + $0x4c] sm:$0xf]
    %v574 = vld [vmem:[#allocation7 + $0x50] sm:$0xf]
    %v575 = vld [vmem:[#allocation7 + $0x54] sm:$0xf]
    %v576 = vld [vmem:[#allocation7 + $0x58] sm:$0xf]
    %v577 = vld [vmem:[#allocation7 + $0x5c] sm:$0xf]
    %v578 = vld [vmem:[#allocation7 + $0x60] sm:$0xf]
    %v579 = vld [vmem:[#allocation7 + $0x64] sm:$0xf]
    %v580 = vld [vmem:[#allocation7 + $0x68] sm:$0xf]
    %v581 = vld [vmem:[#allocation7 + $0x6c] sm:$0xf]
    %v582 = vld [vmem:[#allocation7 + $0x70] sm:$0xf]
    %v583 = vld [vmem:[#allocation7 + $0x74] sm:$0xf]
    %v584 = vld [vmem:[#allocation7 + $0x78] sm:$0xf]
    %v585 = vld [vmem:[#allocation7 + $0x7c] sm:$0xf]
    %v586 = vld [vmem:[%s4] sm:$0x1]
    %v588 = vlaneseq
    %v589 = vshrl.u32 %v588, 7
    %v590 = vsub.s32 0, %v589
    %v591 = vrot.slane %v586, %v590
    %v625 = vunpack.c.l.b16 %v554
    %v626 = vunpack.c.l.b16 %v555
    %v627 = vunpack.c.l.b16 %v556
    %v628 = vunpack.c.l.b16 %v557
    %v629 = vunpack.c.l.b16 %v558
    %v630 = vunpack.c.l.b16 %v559
    %v631 = vunpack.c.l.b16 %v560
    %v632 = vunpack.c.l.b16 %v561
    %v633 = vunpack.c.l.b16 %v562
    %v634 = vunpack.c.l.b16 %v563
    %v635 = vunpack.c.l.b16 %v564
    %v636 = vunpack.c.l.b16 %v565
    %v637 = vunpack.c.l.b16 %v566
    %v638 = vunpack.c.l.b16 %v567
    %v639 = vunpack.c.l.b16 %v568
    %v640 = vunpack.c.l.b16 %v569
    %v641 = vunpack.c.l.b16 %v570
    %v642 = vunpack.c.l.b16 %v571
    %v643 = vunpack.c.l.b16 %v572
    %v644 = vunpack.c.l.b16 %v573
    %v645 = vunpack.c.l.b16 %v574
    %v646 = vunpack.c.l.b16 %v575
    %v647 = vunpack.c.l.b16 %v576
    %v648 = vunpack.c.l.b16 %v577
    %v649 = vunpack.c.l.b16 %v578
    %v650 = vunpack.c.l.b16 %v579
    %v651 = vunpack.c.l.b16 %v580
    %v652 = vunpack.c.l.b16 %v581
    %v653 = vunpack.c.l.b16 %v582
    %v654 = vunpack.c.l.b16 %v583
    %v655 = vunpack.c.l.b16 %v584
    %v656 = vunpack.c.l.b16 %v585
    %v657 = vpack.c.b16 %v626, %v625
    %v658 = vpack.c.b16 %v628, %v627
    %v659 = vpack.c.b16 %v630, %v629
    %v660 = vpack.c.b16 %v632, %v631
    %v661 = vpack.c.b16 %v634, %v633
    %v662 = vpack.c.b16 %v636, %v635
    %v663 = vpack.c.b16 %v638, %v637
    %v664 = vpack.c.b16 %v640, %v639
    %v665 = vpack.c.b16 %v642, %v641
    %v666 = vpack.c.b16 %v644, %v643
    %v667 = vpack.c.b16 %v646, %v645
    %v668 = vpack.c.b16 %v648, %v647
    %v669 = vpack.c.b16 %v650, %v649
    %v670 = vpack.c.b16 %v652, %v651
    %v671 = vpack.c.b16 %v654, %v653
    %v672 = vpack.c.b16 %v656, %v655
    %689 = vmatprep.subr.bf16.mxu0 0
    %690 = vmatpush1.bf16.msra.mxu0 %v657
    %691 = vmatprep.subr.bf16.mxu0 0
    %692 = vmatpush1.bf16.msra.mxu0 %v658
    %693 = vmatprep.subr.bf16.mxu0 0
    %694 = vmatpush1.bf16.msra.mxu0 %v659
    %695 = vmatprep.subr.bf16.mxu0 0
    %696 = vmatpush1.bf16.msra.mxu0 %v660
    %697 = vmatprep.subr.bf16.mxu0 0
    %698 = vmatpush1.bf16.msra.mxu0 %v661
    %699 = vmatprep.subr.bf16.mxu0 0
    %700 = vmatpush1.bf16.msra.mxu0 %v662
    %701 = vmatprep.subr.bf16.mxu0 0
    %702 = vmatpush1.bf16.msra.mxu0 %v663
    %703 = vmatprep.subr.bf16.mxu0 0
    %704 = vmatpush1.bf16.msra.mxu0 %v664
    %705 = vmatprep.subr.bf16.mxu0 0
    %706 = vmatpush1.bf16.msra.mxu0 %v665
    %707 = vmatprep.subr.bf16.mxu0 0
    %708 = vmatpush1.bf16.msra.mxu0 %v666
    %709 = vmatprep.subr.bf16.mxu0 0
    %710 = vmatpush1.bf16.msra.mxu0 %v667
    %711 = vmatprep.subr.bf16.mxu0 0
    %712 = vmatpush1.bf16.msra.mxu0 %v668
    %713 = vmatprep.subr.bf16.mxu0 0
    %714 = vmatpush1.bf16.msra.mxu0 %v669
    %715 = vmatprep.subr.bf16.mxu0 0
    %716 = vmatpush1.bf16.msra.mxu0 %v670
    %717 = vmatprep.subr.bf16.mxu0 0
    %718 = vmatpush1.bf16.msra.mxu0 %v671
    %719 = vmatprep.subr.bf16.mxu0 0
    %720 = vmatpush1.bf16.msra.mxu0 %v672
    %721 = vmatprep.mubr.bf16.mxu0 %v553
    %722 = vmatmul.mubr.bf16.gmra.mrb[0].mxu0 %v552
    %v723 = vpop.f32.mrb[0].mxu0
    %v724 = vadd.f32 %v591, %v723
    %v725 = vpop.f32.mrb[0].mxu0
    %v726 = vpop.f32.mrb[0].mxu0
    %v727 = vpop.f32.mrb[0].mxu0
    %728 = vdwg.mxu0
    %729 = vst [vmem:[#allocation9] sm:$0xff] %v724
    // Predicated region
    $region34: #{tpu_custom_call.1} parent=1 // pred_check
      _
    $region35: #{tpu_custom_call.1} parent=1 // pred_check_branch
      %731 = sbr.rel (0) target = $region37
    $region36: #{tpu_custom_call.1} parent=1 // pred_region
      %s733 = ssub.s32 256, 256
      %734 = vsyncadd [#allocation4], %s733
      %s736 = sshll.u32 [#allocation8], 4
      %s737 = int_to_ptr.vmem [resolvable:$true] %s736
      %739 = dma.vmem_to_hbm [thread:$0]  %s737, 256, %s5, [#allocation4]
    $region37: #{tpu_custom_call.1} parent=1 // pred_fallthru
      _
    // Predicated region
    $region38: #{tpu_custom_call.1} parent=1 // pred_check
      _
    $region39: #{tpu_custom_call.1} parent=1 // pred_check_branch
      %741 = sbr.rel (0) target = $region41
    $region40: #{tpu_custom_call.1} parent=1 // pred_region
      %s743 = ssub.s32 128, 128
      %744 = vsyncadd [#allocation10], %s743
      %s746 = sshll.u32 [#allocation9], 4
      %s747 = int_to_ptr.vmem [resolvable:$true] %s746
      %749 = dma.vmem_to_hbm [thread:$0]  %s747, 128, %s6, [#allocation10]
    $region41: #{tpu_custom_call.1} parent=1 // pred_fallthru
      _
    // Predicated region
    $region42: #{tpu_custom_call.1} parent=1 // pred_check
      _
    $region43: #{tpu_custom_call.1} parent=1 // pred_check_branch
      %751 = sbr.rel (0) target = $region45
    $region44: #{tpu_custom_call.1} parent=1 // pred_region
      %752 = dma.done [#allocation4], 256
    $region45: #{tpu_custom_call.1} parent=1 // pred_fallthru
      _
    // Predicated region
    $region46: #{tpu_custom_call.1} parent=1 // pred_check
      _
    $region47: #{tpu_custom_call.1} parent=1 // pred_check_branch
      %754 = sbr.rel (0) target = $region49
    $region48: #{tpu_custom_call.1} parent=1 // pred_region
      %755 = dma.done [#allocation10], 128
    $region49: #{tpu_custom_call.1} parent=1 // pred_fallthru
      _
    %756 = vsyncpa [#allocation3], 1
    %757 = vsyncpa [#allocation6], 1
    %758 = vsyncpa [#allocation4], 1
    %759 = vsyncpa [#allocation10], 1

</llo_original>
